<compile_context>
chip_gen: v5e
topology: v5e:2x2
jax: 0.10.0
libtpu: 0.0.40
codegen_flags: <defaults>
</compile_context>

<pallas_src>
import jax
import jax.numpy as jnp
from jax.experimental import pallas as pl
from jax.experimental.pallas import tpu as pltpu


def _round_up(x, m):
    return ((x + m - 1) // m) * m


def _largest_tile(dim, cap):
    """Largest multiple of 128 that divides `dim` (a 128-multiple) and is <= cap."""
    best = 128
    t = 128
    limit = min(dim, cap)
    while t <= limit:
        if dim % t == 0:
            best = t
        t += 128
    return best


def _device_vmem_bytes():
    try:
        info = pltpu.get_tpu_info()
        v = getattr(info, "vmem_capacity_bytes", None)
        if v:
            return int(v)
    except Exception:
        pass
    # Conservative fallback (v7x-sized). With the divisor-based tiling this only
    # tightens the VMEM budget slightly; it no longer silently shrinks tm.
    return 64 << 20


# --------------------------------------------------------------------------- #
# Kernels
# --------------------------------------------------------------------------- #
def _qkv_single_k_kernel(x_ref, w_ref, b_ref, o_ref):
    """Single reduction step: o = x @ W + b written directly (no accumulator).

    x_ref : (tm, Kp)  token tile in the input dtype (cast to bf16 on the VPU)
    w_ref : (Kp, tn)  pre-transposed bf16 weight tile (resident when tn == Np)
    b_ref : (1,  tn)  f32 bias tile
    o_ref : (tm, tn)  output tile
    """
    x = x_ref[...].astype(w_ref.dtype)                     # f32 -> bf16 on the VPU
    acc = jnp.dot(x, w_ref[...], preferred_element_type=jnp.float32)
    o_ref[...] = (acc + b_ref[...]).astype(o_ref.dtype)


def _qkv_multi_k_kernel(x_ref, w_ref, b_ref, o_ref, acc_ref):
    """Fallback for very large C: K is the last grid axis, f32 VMEM accumulator."""
    k = pl.program_id(2)

    @pl.when(k == 0)
    def _init():
        acc_ref[...] = jnp.zeros_like(acc_ref)

    acc_ref[...] += jnp.dot(x_ref[...].astype(w_ref.dtype), w_ref[...],
                            preferred_element_type=jnp.float32)

    @pl.when(k == pl.num_programs(2) - 1)
    def _finalize():
        o_ref[...] = (acc_ref[...] + b_ref[...]).astype(o_ref.dtype)


# --------------------------------------------------------------------------- #
# Tiling policy
# --------------------------------------------------------------------------- #
def _select_config(M, Kp, Np, in_bytes, out_bytes, comp_bytes, vmem_cap):
    """Pick (tm, tn, tk). tn/tk always divide Np/Kp (both 128-multiples)."""
    budget = int(0.6 * vmem_cap)
    tm = min(512, _round_up(M, 8))

    def est(tm_, tn_, tk_, with_acc):
        e = (2 * tm_ * tk_ * in_bytes        # x tile, double-buffered
             + 2 * tk_ * tn_ * comp_bytes    # weight tile (2x: pipeline buffers)
             + 2 * tn_ * 4                   # bias tile
             + 2 * tm_ * tn_ * out_bytes)    # output tile
        if with_acc:
            e += tm_ * tn_ * 4               # f32 accumulator scratch
        return e

    # Path A: whole (pre-transposed) weight resident, single K step, no col axis.
    if est(tm, Np, Kp, False) <= budget:
        return tm, Np, Kp, est(tm, Np, Kp, False)

    # Path B: tile the output columns, keep a single K step (no accumulator).
    tn = _largest_tile(Np, 512)
    if est(tm, tn, Kp, False) <= budget:
        return tm, tn, Kp, est(tm, tn, Kp, False)

    # Path C: also tile the reduction (accumulator kernel); shrink tm if needed.
    tk = _largest_tile(Kp, 512)
    e = est(tm, tn, tk, True)
    while e > budget and tm > 8:
        tm = max(8, _round_up(tm // 2, 8))
        e = est(tm, tn, tk, True)
    return tm, tn, tk, e


# --------------------------------------------------------------------------- #
# Wrapper
# --------------------------------------------------------------------------- #
def qkv_projection(x2d, weight, bias, *, compute_dtype=jnp.bfloat16, out_dtype=None):
    """out[M, 3C] = x2d[M, C] @ weight[3C, C].T + bias[3C]."""
    M, C = x2d.shape
    C3 = weight.shape[0]
    out_dtype = x2d.dtype if out_dtype is None else out_dtype

    Kp = _round_up(C, 128)
    Np = _round_up(C3, 128)

    in_bytes = jnp.dtype(x2d.dtype).itemsize
    comp_bytes = jnp.dtype(compute_dtype).itemsize
    out_bytes = jnp.dtype(out_dtype).itemsize
    vmem_cap = _device_vmem_bytes()

    tm, tn, tk, vmem_est = _select_config(M, Kp, Np, in_bytes, out_bytes,
                                          comp_bytes, vmem_cap)
    Mp = _round_up(M, tm)

    # Weight: pad -> transpose -> bf16 once (canonical (M,K)@(K,N) form, no
    # in-kernel transposes; amortized over all row tiles / calls).
    w_t = weight
    if Np != C3 or Kp != C:
        w_t = jnp.pad(w_t, ((0, Np - C3), (0, Kp - C)))
    w_t = w_t.T.astype(compute_dtype)                      # (Kp, Np), bf16
    b2d = (bias if Np == C3 else jnp.pad(bias, (0, Np - C3))
           ).reshape(1, Np).astype(jnp.float32)

    # x: zero-pad only (no dtype change here; the kernel casts on the VPU).
    x_p = x2d if (Mp == M and Kp == C) else jnp.pad(x2d, ((0, Mp - M), (0, Kp - C)))

    vmem_limit = int(min(max(vmem_cap - (8 << 20), 32 << 20),
                         max(2 * vmem_est, 32 << 20)))

    n_steps = Np // tn
    k_steps = Kp // tk

    if k_steps == 1:
        grid = (Mp // tm, n_steps)
        kernel = _qkv_single_k_kernel
        in_specs = [
            pl.BlockSpec((tm, Kp), lambda i, j: (i, 0)),   # x row tile
            pl.BlockSpec((Kp, tn), lambda i, j: (0, j)),   # weight (resident if tn==Np)
            pl.BlockSpec((1, tn), lambda i, j: (0, j)),    # bias
        ]
        out_specs = pl.BlockSpec((tm, tn), lambda i, j: (i, j))
        scratch = []
        dims = ("parallel", "parallel")
    else:
        grid = (Mp // tm, n_steps, k_steps)
        kernel = _qkv_multi_k_kernel
        in_specs = [
            pl.BlockSpec((tm, tk), lambda i, j, k: (i, k)),
            pl.BlockSpec((tk, tn), lambda i, j, k: (k, j)),
            pl.BlockSpec((1, tn), lambda i, j, k: (0, j)),
        ]
        out_specs = pl.BlockSpec((tm, tn), lambda i, j, k: (i, j))
        scratch = [pltpu.VMEM((tm, tn), jnp.float32)]
        dims = ("parallel", "parallel", "arbitrary")

    out_p = pl.pallas_call(
        kernel,
        out_shape=jax.ShapeDtypeStruct((Mp, Np), out_dtype),
        grid_spec=pltpu.PrefetchScalarGridSpec(
            num_scalar_prefetch=0,
            grid=grid,
            in_specs=in_specs,
            out_specs=out_specs,
            scratch_shapes=scratch,
        ),
        compiler_params=pltpu.CompilerParams(
            dimension_semantics=dims,
            vmem_limit_bytes=vmem_limit,
        ),
    )(x_p, w_t, b2d)

    if Mp == M and Np == C3:
        return out_p
    return out_p[:M, :C3]


def get_qkv_forward(x, weight, bias, num_heads, *, compute_dtype=jnp.bfloat16,
                    out_dtype=None):
    """
    x      : (B_, N, C)   -- num_windows*B, tokens per window, channels
    weight : (3C, C)      -- PyTorch nn.Linear weight layout (out, in)
    bias   : (3C,)
    Returns q, k, v each of shape (B_, num_heads, N, C // num_heads).
    """
    B_, N, C = x.shape
    head_dim = C // num_heads

    x2d = x.reshape(B_ * N, C)
    qkv = qkv_projection(x2d, weight, bias,
                         compute_dtype=compute_dtype, out_dtype=out_dtype)  # (B_*N, 3C)

    # TODO(synk): fusing the head split into per-head output BlockSpecs is only a
    # win when head_dim is a multiple of 128 (lane-dense stores); for typical
    # Swin head_dims (<=32) the lane-dense (M, 3C) kernel output plus this single
    # XLA copy is the better trade-off. Pass out_dtype=bf16 to halve this pass if
    # downstream attention is bf16.
    qkv = qkv.reshape(B_, N, 3, num_heads, head_dim)
    qkv = jnp.transpose(qkv, (2, 0, 3, 1, 4))                               # (3, B_, H, N, D)
    return qkv[0], qkv[1], qkv[2]


if __name__ == "__main__":
    # Shapes consistent with the module:
    #   window_size=(4,4) -> N=16 tokens/window; input_resolution=(8,8), B=2
    #   -> B_ = 2 * (8/4)*(8/4) = 8 windows; dim=C=32, num_heads=4 -> head_dim=8.
    B_, N, C, num_heads = 8, 16, 32, 4

    key = jax.random.PRNGKey(0)
    kx, kw, kb = jax.random.split(key, 3)
    x = jax.random.normal(kx, (B_, N, C), dtype=jnp.float32)
    weight = jax.random.normal(kw, (3 * C, C), dtype=jnp.float32) * 0.02   # nn.Linear (out, in)
    bias = jax.random.normal(kb, (3 * C,), dtype=jnp.float32) * 0.02

    fwd = jax.jit(get_qkv_forward, static_argnums=(3,))
    q, k, v = fwd(x, weight, bias, num_heads)
    jax.block_until_ready((q, k, v))

    # Pure-JAX reference with the same bf16 operand rounding (f32 accumulation).
    x_r = x.astype(jnp.bfloat16).astype(jnp.float32).reshape(B_ * N, C)
    w_r = weight.astype(jnp.bfloat16).astype(jnp.float32)
    ref = x_r @ w_r.T + bias
    ref = ref.reshape(B_, N, 3, num_heads, C // num_heads)
    ref = jnp.transpose(ref, (2, 0, 3, 1, 4))

    assert q.shape == (B_, num_heads, N, C // num_heads)
    assert jnp.allclose(q, ref[0], atol=2e-3, rtol=2e-3), "q mismatch"
    assert jnp.allclose(k, ref[1], atol=2e-3, rtol=2e-3), "k mismatch"
    assert jnp.allclose(v, ref[2], atol=2e-3, rtol=2e-3), "v mismatch"

    print("KERNEL_OK")
</pallas_src>

<mosaic_0001>
module attributes {stable_mosaic.version = 11 : i64} {
  func.func @_qkv_single_k_kernel(%arg0: i32, %arg1: i32, %arg2: memref<128x128xf32, #tpu.memory_space<vmem>>, %arg3: memref<128x128xbf16, #tpu.memory_space<vmem>>, %arg4: memref<1x128xf32, #tpu.memory_space<vmem>>, %arg5: memref<128x128xf32, #tpu.memory_space<vmem>>) attributes {dimension_semantics = [#tpu.dimension_semantics<parallel>, #tpu.dimension_semantics<parallel>], iteration_bounds = array<i64: 1, 1>, scalar_prefetch = 0 : i64, scratch_operands = 0 : i64, tpu.core_type = #tpu.core_type<tc>, window_params = [{transform_indices = @transform_0, window_bounds = array<i64: 128, 128>}, {transform_indices = @transform_1, window_bounds = array<i64: 128, 128>}, {transform_indices = @transform_2, window_bounds = array<i64: 1, 128>}, {transform_indices = @transform_3, window_bounds = array<i64: 128, 128>}]} {
    %c0 = arith.constant 0 : index
    %c0_0 = arith.constant 0 : index
    %0 = vector.load %arg2[%c0, %c0_0] : memref<128x128xf32, #tpu.memory_space<vmem>>, vector<128x128xf32>
    %1 = arith.truncf %0 : vector<128x128xf32> to vector<128x128xbf16>
    %c0_1 = arith.constant 0 : index
    %c0_2 = arith.constant 0 : index
    %2 = vector.load %arg3[%c0_1, %c0_2] : memref<128x128xbf16, #tpu.memory_space<vmem>>, vector<128x128xbf16>
    %cst = arith.constant dense<0.000000e+00> : vector<128x128xf32>
    %3 = tpu.matmul %1, %2, %cst {dimension_numbers = #tpu.dot_dimension_numbers<[1], [0], [0], [1], [0, 0, 1, 1], [], []>} : vector<128x128xbf16>, vector<128x128xbf16>, vector<128x128xf32> -> vector<128x128xf32>
    %c0_3 = arith.constant 0 : index
    %c0_4 = arith.constant 0 : index
    %4 = vector.load %arg4[%c0_3, %c0_4] : memref<1x128xf32, #tpu.memory_space<vmem>>, vector<1x128xf32>
    %5 = vector.broadcast %4 : vector<1x128xf32> to vector<128x128xf32>
    %6 = arith.addf %3, %5 : vector<128x128xf32>
    %c0_5 = arith.constant 0 : index
    %c0_6 = arith.constant 0 : index
    %7 = vector.load %arg5[%c0_5, %c0_6] : memref<128x128xf32, #tpu.memory_space<vmem>>, vector<128x128xf32>
    tpu.vector_store %arg5[%c0_5, %c0_6], %6 {strides = array<i32>} : memref<128x128xf32, #tpu.memory_space<vmem>>, vector<128x128xf32>,
    return
  }
  func.func @transform_0(%arg0: i32, %arg1: i32) -> (i32, i32) {
    %c0_i32 = arith.constant 0 : i32
    %c0_i32_0 = arith.constant 0 : i32
    return %arg0, %c0_i32 : i32, i32
  }
  func.func @transform_1(%arg0: i32, %arg1: i32) -> (i32, i32) {
    %c0_i32 = arith.constant 0 : i32
    %c0_i32_0 = arith.constant 0 : i32
    return %c0_i32, %arg1 : i32, i32
  }
  func.func @transform_2(%arg0: i32, %arg1: i32) -> (i32, i32) {
    %c0_i32 = arith.constant 0 : i32
    %c0_i32_0 = arith.constant 0 : i32
    return %c0_i32, %arg1 : i32, i32
  }
  func.func @transform_3(%arg0: i32, %arg1: i32) -> (i32, i32) {
    %c0_i32 = arith.constant 0 : i32
    return %arg0, %arg1 : i32, i32
  }
}

</mosaic_0001>

<llo_original>
// kernel: get_qkv_forward.1
$region0: #{get_qkv_forward.1}
  #allocation0 [shape = 'u32[]', space=smem, size = 0x4, offset = 0x4, fixed_abs, tag = 'smem constant byte address 0x4 - core index']
  #allocation1 [shape = 'u32[72,128]{1,0:T(1,128)}', space=vmem, size = 0x9000, scoped, tag = 'internal scratch']
  %s0 = inlined_call_operand.vmem [shape: f32[128,128], index: 0, kind: input, shape index: {}]
  %s1 = inlined_call_operand.vmem [shape: bf16[128,128], index: 1, kind: input, shape index: {}]
  %s2 = inlined_call_operand.vmem [shape: f32[1,128], index: 2, kind: input, shape index: {}]
  %s3 = inlined_call_operand.vmem [shape: f32[128,128], index: 3, kind: output, shape index: {}]
  %s4 = sld [smem:[#allocation0]]
  $region22: #{get_qkv_forward.1} parent=0
    _
  %s6 = ssub.s32 1, %s4
  %s7 = scalar_select 0, %s6, %s4
  // Predicated region
  $region2: #{get_qkv_forward.1} parent=0 // pred_check
    _
  $region3: #{get_qkv_forward.1} parent=0 // pred_check_branch
    %9 = sbr.rel (0) target = $region5
  $region4: #{get_qkv_forward.1} parent=0 // pred_region
    _
  $region5: #{get_qkv_forward.1} parent=0 // pred_fallthru
    _
  // Predicated region
  $region6: #{get_qkv_forward.1} parent=0 // pred_check
    _
  $region7: #{get_qkv_forward.1} parent=0 // pred_check_branch
    %11 = sbr.rel (0) target = $region9
  $region8: #{get_qkv_forward.1} parent=0 // pred_region
    _
  $region9: #{get_qkv_forward.1} parent=0 // pred_fallthru
    _
  // Predicated region
  $region10: #{get_qkv_forward.1} parent=0 // pred_check
    _
  $region11: #{get_qkv_forward.1} parent=0 // pred_check_branch
    %13 = sbr.rel (0) target = $region13
  $region12: #{get_qkv_forward.1} parent=0 // pred_region
    _
  $region13: #{get_qkv_forward.1} parent=0 // pred_fallthru
    _
  %v14 = vld [vmem:[%s0] sm:$0xff]
  %v15 = vld [vmem:[%s0 + $0x8] sm:$0xff]
  %v16 = vld [vmem:[%s0 + $0x10] sm:$0xff]
  %v17 = vld [vmem:[%s0 + $0x18] sm:$0xff]
  %v18 = vld [vmem:[%s0 + $0x20] sm:$0xff]
  %v19 = vld [vmem:[%s0 + $0x28] sm:$0xff]
  %v20 = vld [vmem:[%s0 + $0x30] sm:$0xff]
  %v21 = vld [vmem:[%s0 + $0x38] sm:$0xff]
  %v22 = vld [vmem:[%s0 + $0x40] sm:$0xff]
  %v23 = vld [vmem:[%s0 + $0x48] sm:$0xff]
  %v24 = vld [vmem:[%s0 + $0x50] sm:$0xff]
  %v25 = vld [vmem:[%s0 + $0x58] sm:$0xff]
  %v26 = vld [vmem:[%s0 + $0x60] sm:$0xff]
  %v27 = vld [vmem:[%s0 + $0x68] sm:$0xff]
  %v28 = vld [vmem:[%s0 + $0x70] sm:$0xff]
  %v29 = vld [vmem:[%s0 + $0x78] sm:$0xff]
  %v30 = vpack.c.bf16 %v15, %v14
  %v31 = vpack.c.bf16 %v17, %v16
  %v32 = vpack.c.bf16 %v19, %v18
  %v33 = vpack.c.bf16 %v21, %v20
  %v34 = vpack.c.bf16 %v23, %v22
  %v35 = vpack.c.bf16 %v25, %v24
  %v36 = vpack.c.bf16 %v27, %v26
  %v37 = vpack.c.bf16 %v29, %v28
  %v38 = vld [vmem:[%s1] sm:$0xf]
  %v39 = vld [vmem:[%s1 + $0x4] sm:$0xf]
  %v40 = vld [vmem:[%s1 + $0x8] sm:$0xf]
  %v41 = vld [vmem:[%s1 + $0xc] sm:$0xf]
  %v42 = vld [vmem:[%s1 + $0x10] sm:$0xf]
  %v43 = vld [vmem:[%s1 + $0x14] sm:$0xf]
  %v44 = vld [vmem:[%s1 + $0x18] sm:$0xf]
  %v45 = vld [vmem:[%s1 + $0x1c] sm:$0xf]
  %v46 = vld [vmem:[%s1 + $0x20] sm:$0xf]
  %v47 = vld [vmem:[%s1 + $0x24] sm:$0xf]
  %v48 = vld [vmem:[%s1 + $0x28] sm:$0xf]
  %v49 = vld [vmem:[%s1 + $0x2c] sm:$0xf]
  %v50 = vld [vmem:[%s1 + $0x30] sm:$0xf]
  %v51 = vld [vmem:[%s1 + $0x34] sm:$0xf]
  %v52 = vld [vmem:[%s1 + $0x38] sm:$0xf]
  %v53 = vld [vmem:[%s1 + $0x3c] sm:$0xf]
  %v54 = vld [vmem:[%s2] sm:$0x1]
  %v56 = vperm.slane %v54, 0
  %v74 = vunpack.c.l.b16 %v38
  %v75 = vunpack.c.l.b16 %v39
  %v76 = vunpack.c.l.b16 %v40
  %v77 = vunpack.c.l.b16 %v41
  %v78 = vunpack.c.l.b16 %v42
  %v79 = vunpack.c.l.b16 %v43
  %v80 = vunpack.c.l.b16 %v44
  %v81 = vunpack.c.l.b16 %v45
  %v82 = vunpack.c.l.b16 %v46
  %v83 = vunpack.c.l.b16 %v47
  %v84 = vunpack.c.l.b16 %v48
  %v85 = vunpack.c.l.b16 %v49
  %v86 = vunpack.c.l.b16 %v50
  %v87 = vunpack.c.l.b16 %v51
  %v88 = vunpack.c.l.b16 %v52
  %v89 = vunpack.c.l.b16 %v53
  %v90 = vpack.c.b16 %v75, %v74
  %v91 = vpack.c.b16 %v77, %v76
  %v92 = vpack.c.b16 %v79, %v78
  %v93 = vpack.c.b16 %v81, %v80
  %v94 = vpack.c.b16 %v83, %v82
  %v95 = vpack.c.b16 %v85, %v84
  %v96 = vpack.c.b16 %v87, %v86
  %v97 = vpack.c.b16 %v89, %v88
  %106 = vmatpush.bf16.msra.mxu0 %v97
  %107 = vmatpush.bf16.msra.mxu0 %v96
  %108 = vmatpush.bf16.msra.mxu0 %v95
  %109 = vmatpush.bf16.msra.mxu0 %v94
  %110 = vmatpush.bf16.msra.mxu0 %v93
  %111 = vmatpush.bf16.msra.mxu0 %v92
  %112 = vmatpush.bf16.msra.mxu0 %v91
  %113 = vmatpush.bf16.msra.mxu0 %v90
  %114 = vmatmul.bf16.gmra.mxu0 %v30
  %v115 = vpop.f32.mrf.mxu0
  %v116 = vadd.f32 %v56, %v115
  %v117 = vpop.f32.mrf.mxu0
  %v118 = vadd.f32 %v56, %v117
  %119 = vmatmul.bf16.gmra.mxu0 %v31
  %v120 = vpop.f32.mrf.mxu0
  %v121 = vadd.f32 %v56, %v120
  %v122 = vpop.f32.mrf.mxu0
  %v123 = vadd.f32 %v56, %v122
  %124 = vmatmul.bf16.gmra.mxu0 %v32
  %v125 = vpop.f32.mrf.mxu0
  %v126 = vadd.f32 %v56, %v125
  %v127 = vpop.f32.mrf.mxu0
  %v128 = vadd.f32 %v56, %v127
  %129 = vmatmul.bf16.gmra.mxu0 %v33
  %v130 = vpop.f32.mrf.mxu0
  %v131 = vadd.f32 %v56, %v130
  %v132 = vpop.f32.mrf.mxu0
  %v133 = vadd.f32 %v56, %v132
  %134 = vmatmul.bf16.gmra.mxu0 %v34
  %v135 = vpop.f32.mrf.mxu0
  %v136 = vadd.f32 %v56, %v135
  %v137 = vpop.f32.mrf.mxu0
  %v138 = vadd.f32 %v56, %v137
  %139 = vmatmul.bf16.gmra.mxu0 %v35
  %v140 = vpop.f32.mrf.mxu0
  %v141 = vadd.f32 %v56, %v140
  %v142 = vpop.f32.mrf.mxu0
  %v143 = vadd.f32 %v56, %v142
  %144 = vmatmul.bf16.gmra.mxu0 %v36
  %v145 = vpop.f32.mrf.mxu0
  %v146 = vadd.f32 %v56, %v145
  %v147 = vpop.f32.mrf.mxu0
  %v148 = vadd.f32 %v56, %v147
  %149 = vmatmul.bf16.gmra.mxu0 %v37
  %v150 = vpop.f32.mrf.mxu0
  %v151 = vadd.f32 %v56, %v150
  %v152 = vpop.f32.mrf.mxu0
  %v153 = vadd.f32 %v56, %v152
  %154 = vdwg.mxu0
  %155 = vst [vmem:[%s3] sm:$0xff] %v116
  %156 = vst [vmem:[%s3 + $0x8] sm:$0xff] %v118
  %157 = vst [vmem:[%s3 + $0x10] sm:$0xff] %v121
  %158 = vst [vmem:[%s3 + $0x18] sm:$0xff] %v123
  %159 = vst [vmem:[%s3 + $0x20] sm:$0xff] %v126
  %160 = vst [vmem:[%s3 + $0x28] sm:$0xff] %v128
  %161 = vst [vmem:[%s3 + $0x30] sm:$0xff] %v131
  %162 = vst [vmem:[%s3 + $0x38] sm:$0xff] %v133
  %163 = vst [vmem:[%s3 + $0x40] sm:$0xff] %v136
  %164 = vst [vmem:[%s3 + $0x48] sm:$0xff] %v138
  %165 = vst [vmem:[%s3 + $0x50] sm:$0xff] %v141
  %166 = vst [vmem:[%s3 + $0x58] sm:$0xff] %v143
  %167 = vst [vmem:[%s3 + $0x60] sm:$0xff] %v146
  %168 = vst [vmem:[%s3 + $0x68] sm:$0xff] %v148
  %169 = vst [vmem:[%s3 + $0x70] sm:$0xff] %v151
  %170 = vst [vmem:[%s3 + $0x78] sm:$0xff] %v153
  // Predicated region
  $region14: #{get_qkv_forward.1} parent=0 // pred_check
    _
  $region15: #{get_qkv_forward.1} parent=0 // pred_check_branch
    %172 = sbr.rel (0) target = $region17
  $region16: #{get_qkv_forward.1} parent=0 // pred_region
    _
  $region17: #{get_qkv_forward.1} parent=0 // pred_fallthru
    _
  // Predicated region
  $region18: #{get_qkv_forward.1} parent=0 // pred_check
    _
  $region19: #{get_qkv_forward.1} parent=0 // pred_check_branch
    %174 = sbr.rel (0) target = $region21
  $region20: #{get_qkv_forward.1} parent=0 // pred_region
    _
  $region21: #{get_qkv_forward.1} parent=0 // pred_fallthru
    _

</llo_original>
